<compile_context>
chip_gen: v5e
topology: v5e:2x2
jax: 0.10.0
libtpu: 0.0.40
codegen_flags: <defaults>
</compile_context>

<pallas_src>
import functools

import numpy as np
import jax
import jax.numpy as jnp
from jax.experimental import pallas as pl
from jax.experimental.pallas import tpu as pltpu


def _adaptive_pool_matrix(in_size: int, out_size: int) -> np.ndarray:
    """Averaging matrix P (out_size, in_size): P @ v == AdaptiveAvgPool along one axis."""
    P = np.zeros((out_size, in_size), dtype=np.float32)
    for o in range(out_size):
        start = (o * in_size) // out_size
        end = -(-((o + 1) * in_size) // out_size)  # ceil div
        P[o, start:end] = 1.0 / (end - start)
    return P


def _round_up(x: int, m: int) -> int:
    return (x + m - 1) // m * m


def _efficient_head_kernel(x_ref, m_ref, w_ref, b_ref, o_ref, *, cs: int):
    # x_ref : (TB, cs, H*W)       activation batch tile (f32 or bf16)
    # m_ref : (H*W, ps*ps)        adaptive-pool averaging matrix, f32
    # w_ref : (cs, ps*ps, OUTp)   fc weight (per-channel transposed), bf16
    # b_ref : (1, OUTp)           fc bias, f32
    # o_ref : (TB, OUTp)          output tile
    m = m_ref[...]
    acc = None
    # cs is small for a head -> static unroll.  For very large cs this would move to
    # an "arbitrary" channel grid axis with an f32 accumulator scratch.
    for c in range(cs):
        xc = x_ref[:, c, :]                                           # (TB, H*W)
        pooled = jnp.dot(xc.astype(jnp.float32), m,
                         preferred_element_type=jnp.float32)          # (TB, ps*ps)  f32 pool
        part = jnp.dot(pooled.astype(w_ref.dtype), w_ref[c],
                       preferred_element_type=jnp.float32)            # (TB, OUTp)   f32 acc
        acc = part if acc is None else acc + part
    o_ref[...] = (acc + b_ref[...]).astype(o_ref.dtype)


def make_efficient_head(fc_w, fc_b, *, cs: int, ps: int, n: int, w_dim: int,
                        H: int, W: int):
    """One-time weight prep + returns a jitted forward(x) for x: (bs, cs, H, W) NCHW."""
    out_features = n * w_dim
    psq = ps * ps
    hw = H * W
    assert fc_w.shape == (out_features, psq * cs)
    assert fc_b.shape == (out_features,)
    out_pad = _round_up(out_features, 128)   # lane-dense (unmasked) output stores

    # ---- cached constant prep (runs once, outside the hot path) --------------
    Ph = _adaptive_pool_matrix(H, ps)                                  # (ps, H)
    Pw = _adaptive_pool_matrix(W, ps)                                  # (ps, W)
    # pooled_flat[b,c,:] = kron(Ph,Pw) @ x_flat[b,c,:]  ->  x_flat @ M with M = kron.T
    M = jnp.asarray(np.kron(Ph, Pw).T, dtype=jnp.float32)              # (H*W, ps*ps)

    w3 = jnp.asarray(fc_w, jnp.float32).reshape(out_features, cs, psq)
    w3 = jnp.transpose(w3, (1, 2, 0))                                  # (cs, ps*ps, OUT)
    if out_pad != out_features:
        w3 = jnp.pad(w3, ((0, 0), (0, 0), (0, out_pad - out_features)))
    w3 = w3.astype(jnp.bfloat16)                                       # bf16 MXU operand

    b2 = jnp.asarray(fc_b, jnp.float32).reshape(1, out_features)
    if out_pad != out_features:
        b2 = jnp.pad(b2, ((0, 0), (0, out_pad - out_features)))

    # ---- generation-aware VMEM budget -----------------------------------------
    try:
        vmem_cap = int(pltpu.get_tpu_info().vmem_capacity_bytes)
    except Exception:
        vmem_cap = 64 << 20          # conservative: v7x per-core VMEM
    budget = min(vmem_cap // 2, 32 << 20)            # working-set budget with headroom
    vmem_limit = min(budget + (8 << 20), vmem_cap)   # scoped VMEM limit for the call

    kernel = functools.partial(_efficient_head_kernel, cs=cs)

    def _pick_tb(bs: int, x_itemsize: int) -> int:
        # double-buffered x tile + double-buffered out tile + per-row value slack
        row_bytes = 2 * cs * hw * x_itemsize + 2 * out_pad * 4 + (psq + out_pad) * 4
        fixed = 2 * (hw * psq * 4) + 2 * (cs * psq * out_pad * 2) + 2 * out_pad * 4
        tb_max = max(8, ((budget - fixed) // row_bytes) // 8 * 8)
        bs8 = _round_up(bs, 8)
        if bs8 <= tb_max:
            if bs8 >= 16:
                # >=2 tiles so the parallel axis can use both v7x TensorCores.
                return _round_up(-(-bs8 // 2), 8)
            return bs                 # tiny batch: one full-batch tile, zero padding
        # Batch needs tiling: biggest tile that fits, even tile count for v7x balance.
        ntiles = -(-bs8 // tb_max)
        if ntiles % 2:
            ntiles += 1
        return max(8, _round_up(-(-bs8 // ntiles), 8))

    @jax.jit
    def forward(x):
        bs = x.shape[0]
        assert x.shape[1:] == (cs, H, W)
        tb = _pick_tb(bs, x.dtype.itemsize)
        x3 = x.reshape(bs, cs, hw)          # free contiguous collapse (no HBM copy)
        bs_p = _round_up(bs, tb)
        if bs_p != bs:                       # only multi-tile batches get (small) padding
            x3 = jnp.pad(x3, ((0, bs_p - bs), (0, 0), (0, 0)))
        grid = (bs_p // tb,)

        cost = pl.CostEstimate(
            flops=2 * bs_p * cs * hw * psq + 2 * bs_p * cs * psq * out_pad,
            transcendentals=0,
            bytes_accessed=(bs_p * cs * hw * x.dtype.itemsize   # x
                            + hw * psq * 4                      # pool matrix
                            + cs * psq * out_pad * 2            # fc weight (bf16)
                            + out_pad * 4                       # bias
                            + bs_p * out_pad * x.dtype.itemsize),
        )

        out = pl.pallas_call(
            kernel,
            out_shape=jax.ShapeDtypeStruct((bs_p, out_pad), x.dtype),
            grid_spec=pltpu.PrefetchScalarGridSpec(
                num_scalar_prefetch=0,
                grid=grid,
                in_specs=[
                    pl.BlockSpec((tb, cs, hw), lambda i: (i, 0, 0)),        # x batch tile
                    pl.BlockSpec((hw, psq), lambda i: (0, 0)),              # pool matrix (resident)
                    pl.BlockSpec((cs, psq, out_pad), lambda i: (0, 0, 0)),  # fc weight (resident)
                    pl.BlockSpec((1, out_pad), lambda i: (0, 0)),           # bias (resident)
                ],
                out_specs=pl.BlockSpec((tb, out_pad), lambda i: (i, 0)),
            ),
            compiler_params=pltpu.CompilerParams(
                dimension_semantics=("parallel",),
                vmem_limit_bytes=vmem_limit,
            ),
            cost_estimate=cost,
        )(x3, M, w3, b2)

        out = out[:bs, :out_features]
        return out.reshape(bs, n, w_dim)

    return forward


def _reference(x, fc_w, fc_b, *, ps, n, w_dim):
    """Pure-JAX f32 reference of the PyTorch forward (adaptive pool -> flatten -> fc)."""
    bs, cs, H, W = x.shape
    Ph = jnp.asarray(_adaptive_pool_matrix(H, ps))
    Pw = jnp.asarray(_adaptive_pool_matrix(W, ps))
    pooled = jnp.einsum("ph,bchw,qw->bcpq", Ph, x, Pw)   # (bs, cs, ps, ps)
    flat = pooled.reshape(bs, cs * ps * ps)
    y = flat @ fc_w.T + fc_b
    return y.reshape(bs, n, w_dim)


if __name__ == "__main__":
    # Small shapes consistent with the module.
    bs, cs, H, W = 2, 4, 16, 16
    ps, n, w_dim = 4, 8, 32
    in_features = ps * ps * cs          # 64
    out_features = n * w_dim            # 256

    key = jax.random.PRNGKey(0)
    kx, kw, kb = jax.random.split(key, 3)

    x = jax.random.normal(kx, (bs, cs, H, W), dtype=jnp.float32)
    bound = 1.0 / np.sqrt(in_features)
    fc_w = jax.random.uniform(kw, (out_features, in_features),
                              minval=-bound, maxval=bound, dtype=jnp.float32)
    fc_b = jax.random.uniform(kb, (out_features,),
                              minval=-bound, maxval=bound, dtype=jnp.float32)

    head = make_efficient_head(fc_w, fc_b, cs=cs, ps=ps, n=n, w_dim=w_dim, H=H, W=W)
    out = jax.block_until_ready(head(x))

    ref = _reference(x, fc_w, fc_b, ps=ps, n=n, w_dim=w_dim)
    assert out.shape == (bs, n, w_dim)
    # Pool runs in f32; only the short (cs*ps^2 = 64 term) FC contraction uses bf16
    # operands with f32 accumulation, so error stays within ~bf16 rounding.
    np.testing.assert_allclose(np.asarray(out), np.asarray(ref),
                               rtol=2e-2, atol=1e-2)
    print("KERNEL_OK")
</pallas_src>

<mosaic_0001>
module attributes {stable_mosaic.version = 11 : i64} {
  func.func @_efficient_head_kernel(%arg0: i32, %arg1: memref<2x4x256xf32, #tpu.memory_space<vmem>>, %arg2: memref<256x16xf32, #tpu.memory_space<vmem>>, %arg3: memref<4x16x256xbf16, #tpu.memory_space<vmem>>, %arg4: memref<1x256xf32, #tpu.memory_space<vmem>>, %arg5: memref<2x256xf32, #tpu.memory_space<vmem>>) attributes {dimension_semantics = [#tpu.dimension_semantics<parallel>], iteration_bounds = array<i64: 1>, scalar_prefetch = 0 : i64, scratch_operands = 0 : i64, tpu.core_type = #tpu.core_type<tc>, window_params = [{transform_indices = @transform_0, window_bounds = array<i64: 2, 4, 256>}, {pipeline_mode = #tpu.pipeline_mode<synchronous>, transform_indices = @transform_1, window_bounds = array<i64: 256, 16>}, {pipeline_mode = #tpu.pipeline_mode<synchronous>, transform_indices = @transform_2, window_bounds = array<i64: 4, 16, 256>}, {pipeline_mode = #tpu.pipeline_mode<synchronous>, transform_indices = @transform_3, window_bounds = array<i64: 1, 256>}, {transform_indices = @transform_4, window_bounds = array<i64: 2, 256>}]} {
    %c0 = arith.constant 0 : index
    %c0_0 = arith.constant 0 : index
    %0 = vector.load %arg2[%c0, %c0_0] : memref<256x16xf32, #tpu.memory_space<vmem>>, vector<256x16xf32>
    %c0_1 = arith.constant 0 : index
    %c0_2 = arith.constant 0 : index
    %c0_3 = arith.constant 0 : index
    %1 = vector.load %arg1[%c0_1, %c0_2, %c0_3] : memref<2x4x256xf32, #tpu.memory_space<vmem>>, vector<2x1x256xf32>
    %2 = vector.shape_cast %1 : vector<2x1x256xf32> to vector<2x256xf32>
    %cst = arith.constant dense<0.000000e+00> : vector<2x16xf32>
    %3 = tpu.matmul %2, %0, %cst {dimension_numbers = #tpu.dot_dimension_numbers<[1], [0], [0], [1], [0, 0, 1, 1], [], []>} : vector<2x256xf32>, vector<256x16xf32>, vector<2x16xf32> -> vector<2x16xf32>
    %4 = arith.truncf %3 : vector<2x16xf32> to vector<2x16xbf16>
    %c0_4 = arith.constant 0 : index
    %c0_5 = arith.constant 0 : index
    %c0_6 = arith.constant 0 : index
    %5 = vector.load %arg3[%c0_4, %c0_5, %c0_6] : memref<4x16x256xbf16, #tpu.memory_space<vmem>>, vector<1x16x256xbf16>
    %6 = vector.shape_cast %5 : vector<1x16x256xbf16> to vector<16x256xbf16>
    %cst_7 = arith.constant dense<0.000000e+00> : vector<2x256xf32>
    %7 = tpu.matmul %4, %6, %cst_7 {dimension_numbers = #tpu.dot_dimension_numbers<[1], [0], [0], [1], [0, 0, 1, 1], [], []>} : vector<2x16xbf16>, vector<16x256xbf16>, vector<2x256xf32> -> vector<2x256xf32>
    %c0_8 = arith.constant 0 : index
    %c1 = arith.constant 1 : index
    %c0_9 = arith.constant 0 : index
    %8 = vector.load %arg1[%c0_8, %c1, %c0_9] : memref<2x4x256xf32, #tpu.memory_space<vmem>>, vector<2x1x256xf32>
    %9 = vector.shape_cast %8 : vector<2x1x256xf32> to vector<2x256xf32>
    %cst_10 = arith.constant dense<0.000000e+00> : vector<2x16xf32>
    %10 = tpu.matmul %9, %0, %cst_10 {dimension_numbers = #tpu.dot_dimension_numbers<[1], [0], [0], [1], [0, 0, 1, 1], [], []>} : vector<2x256xf32>, vector<256x16xf32>, vector<2x16xf32> -> vector<2x16xf32>
    %11 = arith.truncf %10 : vector<2x16xf32> to vector<2x16xbf16>
    %c1_11 = arith.constant 1 : index
    %c0_12 = arith.constant 0 : index
    %c0_13 = arith.constant 0 : index
    %12 = vector.load %arg3[%c1_11, %c0_12, %c0_13] : memref<4x16x256xbf16, #tpu.memory_space<vmem>>, vector<1x16x256xbf16>
    %13 = vector.shape_cast %12 : vector<1x16x256xbf16> to vector<16x256xbf16>
    %cst_14 = arith.constant dense<0.000000e+00> : vector<2x256xf32>
    %14 = tpu.matmul %11, %13, %cst_14 {dimension_numbers = #tpu.dot_dimension_numbers<[1], [0], [0], [1], [0, 0, 1, 1], [], []>} : vector<2x16xbf16>, vector<16x256xbf16>, vector<2x256xf32> -> vector<2x256xf32>
    %15 = arith.addf %7, %14 : vector<2x256xf32>
    %c0_15 = arith.constant 0 : index
    %c2 = arith.constant 2 : index
    %c0_16 = arith.constant 0 : index
    %16 = vector.load %arg1[%c0_15, %c2, %c0_16] : memref<2x4x256xf32, #tpu.memory_space<vmem>>, vector<2x1x256xf32>
    %17 = vector.shape_cast %16 : vector<2x1x256xf32> to vector<2x256xf32>
    %cst_17 = arith.constant dense<0.000000e+00> : vector<2x16xf32>
    %18 = tpu.matmul %17, %0, %cst_17 {dimension_numbers = #tpu.dot_dimension_numbers<[1], [0], [0], [1], [0, 0, 1, 1], [], []>} : vector<2x256xf32>, vector<256x16xf32>, vector<2x16xf32> -> vector<2x16xf32>
    %19 = arith.truncf %18 : vector<2x16xf32> to vector<2x16xbf16>
    %c2_18 = arith.constant 2 : index
    %c0_19 = arith.constant 0 : index
    %c0_20 = arith.constant 0 : index
    %20 = vector.load %arg3[%c2_18, %c0_19, %c0_20] : memref<4x16x256xbf16, #tpu.memory_space<vmem>>, vector<1x16x256xbf16>
    %21 = vector.shape_cast %20 : vector<1x16x256xbf16> to vector<16x256xbf16>
    %cst_21 = arith.constant dense<0.000000e+00> : vector<2x256xf32>
    %22 = tpu.matmul %19, %21, %cst_21 {dimension_numbers = #tpu.dot_dimension_numbers<[1], [0], [0], [1], [0, 0, 1, 1], [], []>} : vector<2x16xbf16>, vector<16x256xbf16>, vector<2x256xf32> -> vector<2x256xf32>
    %23 = arith.addf %15, %22 : vector<2x256xf32>
    %c0_22 = arith.constant 0 : index
    %c3 = arith.constant 3 : index
    %c0_23 = arith.constant 0 : index
    %24 = vector.load %arg1[%c0_22, %c3, %c0_23] : memref<2x4x256xf32, #tpu.memory_space<vmem>>, vector<2x1x256xf32>
    %25 = vector.shape_cast %24 : vector<2x1x256xf32> to vector<2x256xf32>
    %cst_24 = arith.constant dense<0.000000e+00> : vector<2x16xf32>
    %26 = tpu.matmul %25, %0, %cst_24 {dimension_numbers = #tpu.dot_dimension_numbers<[1], [0], [0], [1], [0, 0, 1, 1], [], []>} : vector<2x256xf32>, vector<256x16xf32>, vector<2x16xf32> -> vector<2x16xf32>
    %27 = arith.truncf %26 : vector<2x16xf32> to vector<2x16xbf16>
    %c3_25 = arith.constant 3 : index
    %c0_26 = arith.constant 0 : index
    %c0_27 = arith.constant 0 : index
    %28 = vector.load %arg3[%c3_25, %c0_26, %c0_27] : memref<4x16x256xbf16, #tpu.memory_space<vmem>>, vector<1x16x256xbf16>
    %29 = vector.shape_cast %28 : vector<1x16x256xbf16> to vector<16x256xbf16>
    %cst_28 = arith.constant dense<0.000000e+00> : vector<2x256xf32>
    %30 = tpu.matmul %27, %29, %cst_28 {dimension_numbers = #tpu.dot_dimension_numbers<[1], [0], [0], [1], [0, 0, 1, 1], [], []>} : vector<2x16xbf16>, vector<16x256xbf16>, vector<2x256xf32> -> vector<2x256xf32>
    %31 = arith.addf %23, %30 : vector<2x256xf32>
    %c0_29 = arith.constant 0 : index
    %c0_30 = arith.constant 0 : index
    %32 = vector.load %arg4[%c0_29, %c0_30] : memref<1x256xf32, #tpu.memory_space<vmem>>, vector<1x256xf32>
    %33 = vector.broadcast %32 : vector<1x256xf32> to vector<2x256xf32>
    %34 = arith.addf %31, %33 : vector<2x256xf32>
    %c0_31 = arith.constant 0 : index
    %c0_32 = arith.constant 0 : index
    %35 = vector.load %arg5[%c0_31, %c0_32] : memref<2x256xf32, #tpu.memory_space<vmem>>, vector<2x256xf32>
    tpu.vector_store %arg5[%c0_31, %c0_32], %34 {strides = array<i32>} : memref<2x256xf32, #tpu.memory_space<vmem>>, vector<2x256xf32>,
    return
  }
  func.func @transform_0(%arg0: i32) -> (i32, i32, i32) {
    %c0_i32 = arith.constant 0 : i32
    %c0_i32_0 = arith.constant 0 : i32
    %c0_i32_1 = arith.constant 0 : i32
    return %arg0, %c0_i32, %c0_i32_0 : i32, i32, i32
  }
  func.func @transform_1(%arg0: i32) -> (i32, i32) {
    %c0_i32 = arith.constant 0 : i32
    %c0_i32_0 = arith.constant 0 : i32
    %c0_i32_1 = arith.constant 0 : i32
    return %c0_i32, %c0_i32_0 : i32, i32
  }
  func.func @transform_2(%arg0: i32) -> (i32, i32, i32) {
    %c0_i32 = arith.constant 0 : i32
    %c0_i32_0 = arith.constant 0 : i32
    %c0_i32_1 = arith.constant 0 : i32
    %c0_i32_2 = arith.constant 0 : i32
    return %c0_i32, %c0_i32_0, %c0_i32_1 : i32, i32, i32
  }
  func.func @transform_3(%arg0: i32) -> (i32, i32) {
    %c0_i32 = arith.constant 0 : i32
    %c0_i32_0 = arith.constant 0 : i32
    %c0_i32_1 = arith.constant 0 : i32
    return %c0_i32, %c0_i32_0 : i32, i32
  }
  func.func @transform_4(%arg0: i32) -> (i32, i32) {
    %c0_i32 = arith.constant 0 : i32
    %c0_i32_0 = arith.constant 0 : i32
    return %arg0, %c0_i32 : i32, i32
  }
}

</mosaic_0001>

<llo_original>
// kernel: forward.1
$region0: #{forward.1}
  #allocation0 [shape = 'u32[]', space=smem, size = 0x4, offset = 0x4, fixed_abs, tag = 'smem constant byte address 0x4 - core index']
  #allocation1 [shape = 'u32[72,128]{1,0:T(1,128)}', space=vmem, size = 0x9000, scoped, tag = 'internal scratch']
  %s0 = inlined_call_operand.vmem [shape: f32[2,4,256], index: 0, kind: input, shape index: {}]
  %s1 = inlined_call_operand.hbm [shape: f32[256,16], index: 1, kind: input, shape index: {}]
  %s2 = inlined_call_operand.vmem [shape: bf16[4,16,256], index: 2, kind: input, shape index: {}]
  %s3 = inlined_call_operand.vmem [shape: f32[1,256], index: 3, kind: input, shape index: {}]
  %s4 = inlined_call_operand.vmem [shape: f32[2,256], index: 4, kind: output, shape index: {}]
  %s5 = sld [smem:[#allocation0]]
  $region30: #{forward.1} parent=0
    _
  %s7 = ssub.s32 1, %s5
  %s8 = scalar_select 0, %s7, %s5
  $region1: #{forward.1} parent=0
    #allocation2 [shape = 'u8[131072]{0}', space=vmem, size = 0x20000, scoped, tag = 'input window, operand 1, single buffered']
    #allocation3 [shape = 's32[1]{0}', space=sflag, size = 0x4, scoped, tag = 'scoped memory for forward.1']
    %9 = vsyncpa [#allocation3], 0
    // Predicated region
    $region2: #{forward.1} parent=1 // pred_check
      _
    $region3: #{forward.1} parent=1 // pred_check_branch
      %11 = sbr.rel (0) target = $region5
    $region4: #{forward.1} parent=1 // pred_region
      _
    $region5: #{forward.1} parent=1 // pred_fallthru
      _
    // Predicated region
    $region6: #{forward.1} parent=1 // pred_check
      _
    $region7: #{forward.1} parent=1 // pred_check_branch
      %13 = sbr.rel (0) target = $region9
    $region8: #{forward.1} parent=1 // pred_region
      %15 = vsyncadd [#allocation3], 0
      %s16 = sshll.u32 %s1, 4
      %s17 = int_to_ptr.hbm [resolvable:$true] %s16
      %s18 = sshll.u32 [#allocation2], 4
      %s19 = int_to_ptr.vmem [resolvable:$true] %s18
      %24 = dma.hbm_to_vmem [thread:$0]  %s17, 4096, %s19, [#allocation3], 128, 128, 8
    $region9: #{forward.1} parent=1 // pred_fallthru
      _
    // Predicated region
    $region10: #{forward.1} parent=1 // pred_check
      _
    $region11: #{forward.1} parent=1 // pred_check_branch
      %26 = sbr.rel (0) target = $region13
    $region12: #{forward.1} parent=1 // pred_region
      _
    $region13: #{forward.1} parent=1 // pred_fallthru
      _
    // Predicated region
    $region14: #{forward.1} parent=1 // pred_check
      _
    $region15: #{forward.1} parent=1 // pred_check_branch
      %28 = sbr.rel (0) target = $region17
    $region16: #{forward.1} parent=1 // pred_region
      _
    $region17: #{forward.1} parent=1 // pred_fallthru
      _
    // Predicated region
    $region18: #{forward.1} parent=1 // pred_check
      _
    $region19: #{forward.1} parent=1 // pred_check_branch
      %30 = sbr.rel (0) target = $region21
    $region20: #{forward.1} parent=1 // pred_region
      %32 = dma.done [#allocation3], 4096
    $region21: #{forward.1} parent=1 // pred_fallthru
      _
    %v34 = vld [vmem:[#allocation2] sm:$0xff]
    %v35 = vld [vmem:[#allocation2 + $0x8] sm:$0xff]
    %v36 = vld [vmem:[#allocation2 + $0x10] sm:$0xff]
    %v37 = vld [vmem:[#allocation2 + $0x18] sm:$0xff]
    %v38 = vld [vmem:[#allocation2 + $0x20] sm:$0xff]
    %v39 = vld [vmem:[#allocation2 + $0x28] sm:$0xff]
    %v40 = vld [vmem:[#allocation2 + $0x30] sm:$0xff]
    %v41 = vld [vmem:[#allocation2 + $0x38] sm:$0xff]
    %v42 = vld [vmem:[#allocation2 + $0x40] sm:$0xff]
    %v43 = vld [vmem:[#allocation2 + $0x48] sm:$0xff]
    %v44 = vld [vmem:[#allocation2 + $0x50] sm:$0xff]
    %v45 = vld [vmem:[#allocation2 + $0x58] sm:$0xff]
    %v46 = vld [vmem:[#allocation2 + $0x60] sm:$0xff]
    %v47 = vld [vmem:[#allocation2 + $0x68] sm:$0xff]
    %v48 = vld [vmem:[#allocation2 + $0x70] sm:$0xff]
    %v49 = vld [vmem:[#allocation2 + $0x78] sm:$0xff]
    %v50 = vld [vmem:[#allocation2 + $0x80] sm:$0xff]
    %v51 = vld [vmem:[#allocation2 + $0x88] sm:$0xff]
    %v52 = vld [vmem:[#allocation2 + $0x90] sm:$0xff]
    %v53 = vld [vmem:[#allocation2 + $0x98] sm:$0xff]
    %v54 = vld [vmem:[#allocation2 + $0xa0] sm:$0xff]
    %v55 = vld [vmem:[#allocation2 + $0xa8] sm:$0xff]
    %v56 = vld [vmem:[#allocation2 + $0xb0] sm:$0xff]
    %v57 = vld [vmem:[#allocation2 + $0xb8] sm:$0xff]
    %v58 = vld [vmem:[#allocation2 + $0xc0] sm:$0xff]
    %v59 = vld [vmem:[#allocation2 + $0xc8] sm:$0xff]
    %v60 = vld [vmem:[#allocation2 + $0xd0] sm:$0xff]
    %v61 = vld [vmem:[#allocation2 + $0xd8] sm:$0xff]
    %v62 = vld [vmem:[#allocation2 + $0xe0] sm:$0xff]
    %v63 = vld [vmem:[#allocation2 + $0xe8] sm:$0xff]
    %v64 = vld [vmem:[#allocation2 + $0xf0] sm:$0xff]
    %v65 = vld [vmem:[#allocation2 + $0xf8] sm:$0xff]
    %v66 = vld [vmem:[%s0] ss:$4 sm:$0x3]
    %s67 = scalar_lea.vmem %s0, 8
    %v68 = vld [vmem:[%s67] ss:$4 sm:$0x3]
    %71 = vst [vmem:[#allocation1] ss:$9 sm:$0xff] %v66
    %s72 = scalar_lea.vmem [#allocation1], 1
    %73 = vst [vmem:[%s72] ss:$9 sm:$0xff] %v68
    %v74 = vld [vmem:[#allocation1] sm:$0xff]
    %v75 = vld [vmem:[#allocation1 + $0x9] sm:$0xff]
    %78 = vmatpush.msra.mxu0 %v49
    %79 = vmatpush.msra.mxu0 %v48
    %80 = vmatpush.msra.mxu0 %v47
    %81 = vmatpush.msra.mxu0 %v46
    %82 = vmatpush.msra.mxu0 %v45
    %83 = vmatpush.msra.mxu0 %v44
    %84 = vmatpush.msra.mxu0 %v43
    %85 = vmatpush.msra.mxu0 %v42
    %86 = vmatpush.msra.mxu0 %v41
    %87 = vmatpush.msra.mxu0 %v40
    %88 = vmatpush.msra.mxu0 %v39
    %89 = vmatpush.msra.mxu0 %v38
    %90 = vmatpush.msra.mxu0 %v37
    %91 = vmatpush.msra.mxu0 %v36
    %92 = vmatpush.msra.mxu0 %v35
    %93 = vmatpush.msra.mxu0 %v34
    %94 = vmatmul.f32.gmra.mxu0 %v74
    %v95 = vpop.f32.mrf.mxu0
    %v96 = vadd.f32 0.0, %v95
    %97 = vdwg.mxu0
    %98 = vmatpush.msra.mxu0 %v65
    %99 = vmatpush.msra.mxu0 %v64
    %100 = vmatpush.msra.mxu0 %v63
    %101 = vmatpush.msra.mxu0 %v62
    %102 = vmatpush.msra.mxu0 %v61
    %103 = vmatpush.msra.mxu0 %v60
    %104 = vmatpush.msra.mxu0 %v59
    %105 = vmatpush.msra.mxu0 %v58
    %106 = vmatpush.msra.mxu0 %v57
    %107 = vmatpush.msra.mxu0 %v56
    %108 = vmatpush.msra.mxu0 %v55
    %109 = vmatpush.msra.mxu0 %v54
    %110 = vmatpush.msra.mxu0 %v53
    %111 = vmatpush.msra.mxu0 %v52
    %112 = vmatpush.msra.mxu0 %v51
    %113 = vmatpush.msra.mxu0 %v50
    %114 = vmatmul.f32.gmra.mxu0 %v75
    %v115 = vpop.f32.mrf.mxu0
    %v116 = vadd.f32 %v96, %v115
    %117 = vdwg.mxu0
    %v118 = vpack.c.bf16 %v116, %v116
    %v119 = vld [vmem:[%s2] sm:$0xff]
    %v120 = vld [vmem:[%s2 + $0x8] sm:$0xff]
    %s121 = scalar_lea.vmem %s0, 1
    %v122 = vld [vmem:[%s121] ss:$4 sm:$0x3]
    %s123 = scalar_lea.vmem %s0, 9
    %v124 = vld [vmem:[%s123] ss:$4 sm:$0x3]
    %127 = vst [vmem:[#allocation1] ss:$9 sm:$0xff] %v122
    %s128 = scalar_lea.vmem [#allocation1], 1
    %129 = vst [vmem:[%s128] ss:$9 sm:$0xff] %v124
    %v130 = vld [vmem:[#allocation1] sm:$0xff]
    %v131 = vld [vmem:[#allocation1 + $0x9] sm:$0xff]
    %134 = vmatpush.msra.mxu0 %v49
    %135 = vmatpush.msra.mxu0 %v48
    %136 = vmatpush.msra.mxu0 %v47
    %137 = vmatpush.msra.mxu0 %v46
    %138 = vmatpush.msra.mxu0 %v45
    %139 = vmatpush.msra.mxu0 %v44
    %140 = vmatpush.msra.mxu0 %v43
    %141 = vmatpush.msra.mxu0 %v42
    %142 = vmatpush.msra.mxu0 %v41
    %143 = vmatpush.msra.mxu0 %v40
    %144 = vmatpush.msra.mxu0 %v39
    %145 = vmatpush.msra.mxu0 %v38
    %146 = vmatpush.msra.mxu0 %v37
    %147 = vmatpush.msra.mxu0 %v36
    %148 = vmatpush.msra.mxu0 %v35
    %149 = vmatpush.msra.mxu0 %v34
    %150 = vmatmul.f32.gmra.mxu0 %v130
    %v151 = vpop.f32.mrf.mxu0
    %v152 = vadd.f32 0.0, %v151
    %153 = vdwg.mxu0
    %154 = vmatpush.msra.mxu0 %v65
    %155 = vmatpush.msra.mxu0 %v64
    %156 = vmatpush.msra.mxu0 %v63
    %157 = vmatpush.msra.mxu0 %v62
    %158 = vmatpush.msra.mxu0 %v61
    %159 = vmatpush.msra.mxu0 %v60
    %160 = vmatpush.msra.mxu0 %v59
    %161 = vmatpush.msra.mxu0 %v58
    %162 = vmatpush.msra.mxu0 %v57
    %163 = vmatpush.msra.mxu0 %v56
    %164 = vmatpush.msra.mxu0 %v55
    %165 = vmatpush.msra.mxu0 %v54
    %166 = vmatpush.msra.mxu0 %v53
    %167 = vmatpush.msra.mxu0 %v52
    %168 = vmatpush.msra.mxu0 %v51
    %169 = vmatpush.msra.mxu0 %v50
    %170 = vmatmul.f32.gmra.mxu0 %v131
    %v171 = vpop.f32.mrf.mxu0
    %v172 = vadd.f32 %v152, %v171
    %173 = vdwg.mxu0
    %v174 = vpack.c.bf16 %v172, %v172
    %s175 = scalar_lea.vmem %s2, 16
    %v176 = vld [vmem:[%s175] sm:$0xff]
    %v177 = vld [vmem:[%s175 + $0x8] sm:$0xff]
    %v180 = vunpack.c.l.b16 %v176
    %v181 = vunpack.c.h.b16 %v176
    %v182 = vunpack.c.l.b16 %v177
    %v183 = vunpack.c.h.b16 %v177
    %v184 = vpack.c.b16 %v182, %v180
    %v185 = vpack.c.b16 %v183, %v181
    %vm188 = vcmask 130048
    %v190 = vsel %vm188, %v174, 0
    %192 = vmatpush.bf16.msra.mxu0 0
    %193 = vmatpush.bf16.msra.mxu0 0
    %194 = vmatpush.bf16.msra.mxu0 0
    %195 = vmatpush.bf16.msra.mxu0 0
    %196 = vmatpush.bf16.msra.mxu0 0
    %197 = vmatpush.bf16.msra.mxu0 0
    %198 = vmatpush.bf16.msra.mxu0 0
    %199 = vmatpush.bf16.msra.mxu0 %v184
    %200 = vmatmul.bf16.gmra.mxu0 %v190
    %v201 = vpop.f32.mrf.mxu0
    %v202 = vadd.f32 0.0, %v201
    %v203 = vpop.f32.mrf.mxu0
    %204 = vdwg.mxu0
    %205 = vmatpush.bf16.msra.mxu0 0
    %206 = vmatpush.bf16.msra.mxu0 0
    %207 = vmatpush.bf16.msra.mxu0 0
    %208 = vmatpush.bf16.msra.mxu0 0
    %209 = vmatpush.bf16.msra.mxu0 0
    %210 = vmatpush.bf16.msra.mxu0 0
    %211 = vmatpush.bf16.msra.mxu0 0
    %212 = vmatpush.bf16.msra.mxu0 %v185
    %213 = vmatmul.bf16.gmra.mxu0 %v190
    %v214 = vpop.f32.mrf.mxu0
    %v215 = vadd.f32 0.0, %v214
    %v216 = vpop.f32.mrf.mxu0
    %217 = vdwg.mxu0
    %v220 = vunpack.c.l.b16 %v119
    %v221 = vunpack.c.h.b16 %v119
    %v222 = vunpack.c.l.b16 %v120
    %v223 = vunpack.c.h.b16 %v120
    %v224 = vpack.c.b16 %v222, %v220
    %v225 = vpack.c.b16 %v223, %v221
    %v229 = vsel %vm188, %v118, 0
    %231 = vmatpush.bf16.msra.mxu0 0
    %232 = vmatpush.bf16.msra.mxu0 0
    %233 = vmatpush.bf16.msra.mxu0 0
    %234 = vmatpush.bf16.msra.mxu0 0
    %235 = vmatpush.bf16.msra.mxu0 0
    %236 = vmatpush.bf16.msra.mxu0 0
    %237 = vmatpush.bf16.msra.mxu0 0
    %238 = vmatpush.bf16.msra.mxu0 %v224
    %239 = vmatmul.bf16.gmra.mxu0 %v229
    %v240 = vpop.f32.mrf.mxu0
    %v241 = vadd.f32 %v202, %v240
    %v242 = vpop.f32.mrf.mxu0
    %243 = vdwg.mxu0
    %244 = vmatpush.bf16.msra.mxu0 0
    %245 = vmatpush.bf16.msra.mxu0 0
    %246 = vmatpush.bf16.msra.mxu0 0
    %247 = vmatpush.bf16.msra.mxu0 0
    %248 = vmatpush.bf16.msra.mxu0 0
    %249 = vmatpush.bf16.msra.mxu0 0
    %250 = vmatpush.bf16.msra.mxu0 0
    %251 = vmatpush.bf16.msra.mxu0 %v225
    %252 = vmatmul.bf16.gmra.mxu0 %v229
    %v253 = vpop.f32.mrf.mxu0
    %v254 = vadd.f32 %v215, %v253
    %v255 = vpop.f32.mrf.mxu0
    %256 = vdwg.mxu0
    %s257 = scalar_lea.vmem %s0, 2
    %v258 = vld [vmem:[%s257] ss:$4 sm:$0x3]
    %s259 = scalar_lea.vmem %s0, 10
    %v260 = vld [vmem:[%s259] ss:$4 sm:$0x3]
    %263 = vst [vmem:[#allocation1] ss:$9 sm:$0xff] %v258
    %s264 = scalar_lea.vmem [#allocation1], 1
    %265 = vst [vmem:[%s264] ss:$9 sm:$0xff] %v260
    %v266 = vld [vmem:[#allocation1] sm:$0xff]
    %v267 = vld [vmem:[#allocation1 + $0x9] sm:$0xff]
    %270 = vmatpush.msra.mxu0 %v49
    %271 = vmatpush.msra.mxu0 %v48
    %272 = vmatpush.msra.mxu0 %v47
    %273 = vmatpush.msra.mxu0 %v46
    %274 = vmatpush.msra.mxu0 %v45
    %275 = vmatpush.msra.mxu0 %v44
    %276 = vmatpush.msra.mxu0 %v43
    %277 = vmatpush.msra.mxu0 %v42
    %278 = vmatpush.msra.mxu0 %v41
    %279 = vmatpush.msra.mxu0 %v40
    %280 = vmatpush.msra.mxu0 %v39
    %281 = vmatpush.msra.mxu0 %v38
    %282 = vmatpush.msra.mxu0 %v37
    %283 = vmatpush.msra.mxu0 %v36
    %284 = vmatpush.msra.mxu0 %v35
    %285 = vmatpush.msra.mxu0 %v34
    %286 = vmatmul.f32.gmra.mxu0 %v266
    %v287 = vpop.f32.mrf.mxu0
    %v288 = vadd.f32 0.0, %v287
    %289 = vdwg.mxu0
    %290 = vmatpush.msra.mxu0 %v65
    %291 = vmatpush.msra.mxu0 %v64
    %292 = vmatpush.msra.mxu0 %v63
    %293 = vmatpush.msra.mxu0 %v62
    %294 = vmatpush.msra.mxu0 %v61
    %295 = vmatpush.msra.mxu0 %v60
    %296 = vmatpush.msra.mxu0 %v59
    %297 = vmatpush.msra.mxu0 %v58
    %298 = vmatpush.msra.mxu0 %v57
    %299 = vmatpush.msra.mxu0 %v56
    %300 = vmatpush.msra.mxu0 %v55
    %301 = vmatpush.msra.mxu0 %v54
    %302 = vmatpush.msra.mxu0 %v53
    %303 = vmatpush.msra.mxu0 %v52
    %304 = vmatpush.msra.mxu0 %v51
    %305 = vmatpush.msra.mxu0 %v50
    %306 = vmatmul.f32.gmra.mxu0 %v267
    %v307 = vpop.f32.mrf.mxu0
    %v308 = vadd.f32 %v288, %v307
    %309 = vdwg.mxu0
    %v310 = vpack.c.bf16 %v308, %v308
    %s311 = scalar_lea.vmem %s2, 32
    %v312 = vld [vmem:[%s311] sm:$0xff]
    %v313 = vld [vmem:[%s311 + $0x8] sm:$0xff]
    %v316 = vunpack.c.l.b16 %v312
    %v317 = vunpack.c.h.b16 %v312
    %v318 = vunpack.c.l.b16 %v313
    %v319 = vunpack.c.h.b16 %v313
    %v320 = vpack.c.b16 %v318, %v316
    %v321 = vpack.c.b16 %v319, %v317
    %v325 = vsel %vm188, %v310, 0
    %327 = vmatpush.bf16.msra.mxu0 0
    %328 = vmatpush.bf16.msra.mxu0 0
    %329 = vmatpush.bf16.msra.mxu0 0
    %330 = vmatpush.bf16.msra.mxu0 0
    %331 = vmatpush.bf16.msra.mxu0 0
    %332 = vmatpush.bf16.msra.mxu0 0
    %333 = vmatpush.bf16.msra.mxu0 0
    %334 = vmatpush.bf16.msra.mxu0 %v320
    %335 = vmatmul.bf16.gmra.mxu0 %v325
    %v336 = vpop.f32.mrf.mxu0
    %v337 = vadd.f32 0.0, %v336
    %v338 = vpop.f32.mrf.mxu0
    %339 = vdwg.mxu0
    %340 = vmatpush.bf16.msra.mxu0 0
    %341 = vmatpush.bf16.msra.mxu0 0
    %342 = vmatpush.bf16.msra.mxu0 0
    %343 = vmatpush.bf16.msra.mxu0 0
    %344 = vmatpush.bf16.msra.mxu0 0
    %345 = vmatpush.bf16.msra.mxu0 0
    %346 = vmatpush.bf16.msra.mxu0 0
    %347 = vmatpush.bf16.msra.mxu0 %v321
    %348 = vmatmul.bf16.gmra.mxu0 %v325
    %v349 = vpop.f32.mrf.mxu0
    %v350 = vadd.f32 0.0, %v349
    %v351 = vpop.f32.mrf.mxu0
    %352 = vdwg.mxu0
    %v353 = vadd.f32 %v241, %v337
    %v354 = vadd.f32 %v254, %v350
    %s355 = scalar_lea.vmem %s0, 3
    %v356 = vld [vmem:[%s355] ss:$4 sm:$0x3]
    %s357 = scalar_lea.vmem %s0, 11
    %v358 = vld [vmem:[%s357] ss:$4 sm:$0x3]
    %361 = vst [vmem:[#allocation1] ss:$9 sm:$0xff] %v356
    %s362 = scalar_lea.vmem [#allocation1], 1
    %363 = vst [vmem:[%s362] ss:$9 sm:$0xff] %v358
    %v364 = vld [vmem:[#allocation1] sm:$0xff]
    %v365 = vld [vmem:[#allocation1 + $0x9] sm:$0xff]
    %368 = vmatpush.msra.mxu0 %v49
    %369 = vmatpush.msra.mxu0 %v48
    %370 = vmatpush.msra.mxu0 %v47
    %371 = vmatpush.msra.mxu0 %v46
    %372 = vmatpush.msra.mxu0 %v45
    %373 = vmatpush.msra.mxu0 %v44
    %374 = vmatpush.msra.mxu0 %v43
    %375 = vmatpush.msra.mxu0 %v42
    %376 = vmatpush.msra.mxu0 %v41
    %377 = vmatpush.msra.mxu0 %v40
    %378 = vmatpush.msra.mxu0 %v39
    %379 = vmatpush.msra.mxu0 %v38
    %380 = vmatpush.msra.mxu0 %v37
    %381 = vmatpush.msra.mxu0 %v36
    %382 = vmatpush.msra.mxu0 %v35
    %383 = vmatpush.msra.mxu0 %v34
    %384 = vmatmul.f32.gmra.mxu0 %v364
    %v385 = vpop.f32.mrf.mxu0
    %v386 = vadd.f32 0.0, %v385
    %387 = vdwg.mxu0
    %388 = vmatpush.msra.mxu0 %v65
    %389 = vmatpush.msra.mxu0 %v64
    %390 = vmatpush.msra.mxu0 %v63
    %391 = vmatpush.msra.mxu0 %v62
    %392 = vmatpush.msra.mxu0 %v61
    %393 = vmatpush.msra.mxu0 %v60
    %394 = vmatpush.msra.mxu0 %v59
    %395 = vmatpush.msra.mxu0 %v58
    %396 = vmatpush.msra.mxu0 %v57
    %397 = vmatpush.msra.mxu0 %v56
    %398 = vmatpush.msra.mxu0 %v55
    %399 = vmatpush.msra.mxu0 %v54
    %400 = vmatpush.msra.mxu0 %v53
    %401 = vmatpush.msra.mxu0 %v52
    %402 = vmatpush.msra.mxu0 %v51
    %403 = vmatpush.msra.mxu0 %v50
    %404 = vmatmul.f32.gmra.mxu0 %v365
    %v405 = vpop.f32.mrf.mxu0
    %v406 = vadd.f32 %v386, %v405
    %407 = vdwg.mxu0
    %v408 = vpack.c.bf16 %v406, %v406
    %s409 = scalar_lea.vmem %s2, 48
    %v410 = vld [vmem:[%s409] sm:$0xff]
    %v411 = vld [vmem:[%s409 + $0x8] sm:$0xff]
    %v414 = vunpack.c.l.b16 %v410
    %v415 = vunpack.c.h.b16 %v410
    %v416 = vunpack.c.l.b16 %v411
    %v417 = vunpack.c.h.b16 %v411
    %v418 = vpack.c.b16 %v416, %v414
    %v419 = vpack.c.b16 %v417, %v415
    %v423 = vsel %vm188, %v408, 0
    %425 = vmatpush.bf16.msra.mxu0 0
    %426 = vmatpush.bf16.msra.mxu0 0
    %427 = vmatpush.bf16.msra.mxu0 0
    %428 = vmatpush.bf16.msra.mxu0 0
    %429 = vmatpush.bf16.msra.mxu0 0
    %430 = vmatpush.bf16.msra.mxu0 0
    %431 = vmatpush.bf16.msra.mxu0 0
    %432 = vmatpush.bf16.msra.mxu0 %v418
    %433 = vmatmul.bf16.gmra.mxu0 %v423
    %v434 = vpop.f32.mrf.mxu0
    %v435 = vadd.f32 0.0, %v434
    %v436 = vpop.f32.mrf.mxu0
    %437 = vdwg.mxu0
    %438 = vmatpush.bf16.msra.mxu0 0
    %439 = vmatpush.bf16.msra.mxu0 0
    %440 = vmatpush.bf16.msra.mxu0 0
    %441 = vmatpush.bf16.msra.mxu0 0
    %442 = vmatpush.bf16.msra.mxu0 0
    %443 = vmatpush.bf16.msra.mxu0 0
    %444 = vmatpush.bf16.msra.mxu0 0
    %445 = vmatpush.bf16.msra.mxu0 %v419
    %446 = vmatmul.bf16.gmra.mxu0 %v423
    %v447 = vpop.f32.mrf.mxu0
    %v448 = vadd.f32 0.0, %v447
    %v449 = vpop.f32.mrf.mxu0
    %450 = vdwg.mxu0
    %v451 = vadd.f32 %v353, %v435
    %v452 = vadd.f32 %v354, %v448
    %v453 = vld [vmem:[%s3] sm:$0x3]
    %v455 = vperm.slane %v453, 0
    %v456 = vperm.slane %v453, 1
    %v459 = vadd.f32 %v451, %v455
    %v460 = vadd.f32 %v452, %v456
    %v463 = vrot.slane %v460, 6
    %vm464 = vcmask 1041408
    %v465 = vsel %vm464, %v459, %v463
    %467 = vst [vmem:[%s4] sm:$0xf] %v465
    // Predicated region
    $region22: #{forward.1} parent=1 // pred_check
      _
    $region23: #{forward.1} parent=1 // pred_check_branch
      %469 = sbr.rel (0) target = $region25
    $region24: #{forward.1} parent=1 // pred_region
      _
    $region25: #{forward.1} parent=1 // pred_fallthru
      _
    // Predicated region
    $region26: #{forward.1} parent=1 // pred_check
      _
    $region27: #{forward.1} parent=1 // pred_check_branch
      %471 = sbr.rel (0) target = $region29
    $region28: #{forward.1} parent=1 // pred_region
      _
    $region29: #{forward.1} parent=1 // pred_fallthru
      _
    %472 = vsyncpa [#allocation3], 1

</llo_original>
